<compile_context>
chip_gen: v7x
topology: tpu7x:2x2x1
jax: 0.10.0
libtpu: 0.0.40
codegen_flags: <defaults>
</compile_context>

<pallas_src>
import functools

import jax
import jax.numpy as jnp
from jax import lax
from jax.experimental import pallas as pl
from jax.experimental.pallas import tpu as pltpu


def cross_kernel_bm(x_ref, w_ref, b_ref, o_ref, *, num_layers, eps):
    """Batch-major layout: x/out are (B, D); w/b are stacked (L, D)."""
    x0 = x_ref[...].astype(jnp.float32)                       # (B, D)
    batch = x0.shape[0]
    ones_row = jnp.ones((1, batch), dtype=jnp.float32)         # hoisted BN reduction operand
    inv_b = jnp.float32(1.0 / batch)

    def layer(i, out):
        w_i = w_ref[pl.ds(i, 1), :].astype(jnp.float32)        # (1, D)
        b_i = b_ref[pl.ds(i, 1), :].astype(jnp.float32)        # (1, D)
        # Per-row dot <out, w_i> on the VPU (D spans only a few lane tiles;
        # for very large D this could also be pushed onto the MXU).
        s = jnp.sum(out * w_i, axis=-1, keepdims=True)         # (B, 1)
        tmp = x0 * s + b_i + out                                # (B, D)
        # BatchNorm1d (training, affine=False): batch-axis stats via MXU matmuls
        # with a ones row — frees the VALU, which is the binding unit here.
        mean = jnp.dot(ones_row, tmp,
                       preferred_element_type=jnp.float32) * inv_b          # (1, D)
        m2 = jnp.dot(ones_row, tmp * tmp,
                     preferred_element_type=jnp.float32) * inv_b            # (1, D)
        var = jnp.maximum(m2 - mean * mean, 0.0)                # single-pass variance
        return (tmp - mean) * lax.rsqrt(var + eps)

    out = lax.fori_loop(0, num_layers, layer, x0, unroll=num_layers <= 8)
    o_ref[...] = out.astype(o_ref.dtype)


def cross_kernel_fm(x_ref, w_ref, bt_ref, o_ref, *, num_layers, eps):
    """Feature-major (lane-dense) layout: x/out are (D, B); w is (L, D); b is (D, L)."""
    x0 = x_ref[...].astype(jnp.float32)                        # (D, B)
    batch = x0.shape[1]
    ones_col = jnp.ones((batch, 1), dtype=jnp.float32)
    inv_b = jnp.float32(1.0 / batch)

    w_all = w_ref[...].astype(jnp.float32)                     # (L, D), tiny
    b_all = bt_ref[...].astype(jnp.float32)                    # (D, L), tiny

    out = x0
    # Static unroll: cross stacks are shallow, and static slices keep the
    # per-layer weight/bias picks free.
    for i in range(num_layers):
        w_i = w_all[i:i + 1, :]                                 # (1, D)
        b_i = b_all[:, i:i + 1]                                 # (D, 1)
        # <out_col, w> per batch column on the MXU: (1, D) @ (D, B) -> (1, B)
        s = jnp.dot(w_i, out, preferred_element_type=jnp.float32)
        tmp = x0 * s + b_i + out                                # (D, B)
        # Batch axis is now lanes; reduce with MXU matvecs: (D, B) @ (B, 1)
        mean = jnp.dot(tmp, ones_col,
                       preferred_element_type=jnp.float32) * inv_b          # (D, 1)
        m2 = jnp.dot(tmp * tmp, ones_col,
                     preferred_element_type=jnp.float32) * inv_b            # (D, 1)
        var = jnp.maximum(m2 - mean * mean, 0.0)
        out = (tmp - mean) * lax.rsqrt(var + eps)
    o_ref[...] = out.astype(o_ref.dtype)


def cross_forward(x, weight_w, weight_b, *, eps=1e-5):
    """x: (B, D); weight_w, weight_b: (L, D).  Training-mode BN (affine=False)."""
    B, D = x.shape
    L, Dw = weight_w.shape
    assert Dw == D and weight_b.shape == (L, D)

    itemsize = jnp.dtype(x.dtype).itemsize
    # Single-block footprint: I/O buffers + ~6 live f32 (B, D) temporaries + headroom.
    est_vmem = 8 * B * D * 4 + 8 * L * D * 4 + (4 << 20)
    vmem_cap = 64 << 20  # v7x physical VMEM per TensorCore (smallest generation)
    if est_vmem > vmem_cap:
        # TODO(synk): add a B-tiled grid with a two-pass cross-tile BatchNorm
        # (accumulate per-feature sum / sum-of-squares over B tiles, then a
        # second normalize pass) plus a 2-TC split for v7x, for batches that do
        # not fit a single VMEM block.
        raise NotImplementedError(
            f"Cross block (B={B}, D={D}) exceeds the single-block VMEM budget.")

    compiler_params = pltpu.CompilerParams(vmem_limit_bytes=int(est_vmem))
    cost = pl.CostEstimate(
        flops=int(12 * L * B * D),
        transcendentals=int(L * D),
        bytes_accessed=int((2 * B * D + 2 * L * D) * itemsize),
    )
    vmem = pltpu.MemorySpace.VMEM

    # Lane-dense layout when the feature dim would otherwise waste lanes
    # (D < 128) and the batch can fill lane tiles (B >= 128).
    feature_major = (D < 128) and (B >= 128)

    if feature_major:
        kernel = functools.partial(cross_kernel_fm, num_layers=L, eps=eps)
        out_t = pl.pallas_call(
            kernel,
            out_shape=jax.ShapeDtypeStruct((D, B), x.dtype),
            in_specs=[pl.BlockSpec(memory_space=vmem)] * 3,
            out_specs=pl.BlockSpec(memory_space=vmem),
            compiler_params=compiler_params,
            cost_estimate=cost,
        )(x.T, weight_w, weight_b.T)
        return out_t.T

    kernel = functools.partial(cross_kernel_bm, num_layers=L, eps=eps)
    return pl.pallas_call(
        kernel,
        out_shape=jax.ShapeDtypeStruct((B, D), x.dtype),
        in_specs=[pl.BlockSpec(memory_space=vmem)] * 3,
        out_specs=pl.BlockSpec(memory_space=vmem),
        compiler_params=compiler_params,
        cost_estimate=cost,
    )(x, weight_w, weight_b)


def cross_reference(x, weight_w, weight_b, *, eps=1e-5):
    """Pure-JAX reference mirroring the PyTorch forward (training-mode BN)."""
    x0 = x.astype(jnp.float32)
    out = x0
    for i in range(weight_w.shape[0]):
        w_i = weight_w[i].astype(jnp.float32)[None, :]
        b_i = weight_b[i].astype(jnp.float32)[None, :]
        s = jnp.sum(out * w_i, axis=-1, keepdims=True)
        tmp = x0 * s + b_i + out
        mean = jnp.mean(tmp, axis=0, keepdims=True)
        var = jnp.mean((tmp - mean) ** 2, axis=0, keepdims=True)
        out = (tmp - mean) * lax.rsqrt(var + eps)
    return out.astype(x.dtype)


if __name__ == "__main__":
    configs = [
        # (batch, input_dim, num_cross_layers)
        (8, 32, 3),      # tiny toy config -> batch-major path
        (128, 32, 3),    # lane-dense feature-major path
        (16, 256, 10),   # wider features + deeper stack -> rolled fori_loop path
    ]
    key = jax.random.PRNGKey(0)
    for batch, input_dim, num_layers in configs:
        key, kx, kw, kb = jax.random.split(key, 4)
        x = jax.random.normal(kx, (batch, input_dim), dtype=jnp.float32)
        # torch.nn.init.normal_ -> standard normal, one (D,) vector per layer.
        weight_w = jax.random.normal(kw, (num_layers, input_dim), dtype=jnp.float32)
        weight_b = jax.random.normal(kb, (num_layers, input_dim), dtype=jnp.float32)

        out = jax.block_until_ready(cross_forward(x, weight_w, weight_b))
        ref = cross_reference(x, weight_w, weight_b)
        assert out.shape == (batch, input_dim)
        assert jnp.allclose(out, ref, atol=1e-3, rtol=1e-3), (
            f"mismatch vs reference for config {(batch, input_dim, num_layers)}")

    print("KERNEL_OK")
</pallas_src>

<mosaic_0001>
module attributes {stable_mosaic.version = 11 : i64} {
  func.func @cross_kernel_bm(%arg0: memref<8x32xf32, #tpu.memory_space<vmem>>, %arg1: memref<3x32xf32, #tpu.memory_space<vmem>>, %arg2: memref<3x32xf32, #tpu.memory_space<vmem>>, %arg3: memref<8x32xf32, #tpu.memory_space<vmem>>) attributes {dimension_semantics = [], scalar_prefetch = 0 : i64, scratch_operands = 0 : i64, tpu.core_type = #tpu.core_type<tc>} {
    %c0 = arith.constant 0 : index
    %c0_0 = arith.constant 0 : index
    %0 = vector.load %arg0[%c0, %c0_0] : memref<8x32xf32, #tpu.memory_space<vmem>>, vector<8x32xf32>
    %cst = arith.constant 1.000000e+00 : f32
    %1 = vector.broadcast %cst : f32 to vector<1x8xf32>
    %cst_1 = arith.constant 1.250000e-01 : f32
    %c0_i32 = arith.constant 0 : i32
    %2 = arith.index_cast %c0_i32 : i32 to index
    %c0_2 = arith.constant 0 : index
    %3 = vector.load %arg1[%2, %c0_2] : memref<3x32xf32, #tpu.memory_space<vmem>>, vector<1x32xf32>
    %4 = arith.index_cast %c0_i32 : i32 to index
    %c0_3 = arith.constant 0 : index
    %5 = vector.load %arg2[%4, %c0_3] : memref<3x32xf32, #tpu.memory_space<vmem>>, vector<1x32xf32>
    %6 = vector.broadcast %3 : vector<1x32xf32> to vector<8x32xf32>
    %7 = arith.mulf %0, %6 : vector<8x32xf32>
    %cst_4 = arith.constant dense<0.000000e+00> : vector<8xf32>
    %8 = vector.multi_reduction <add>, %7, %cst_4 [1] : vector<8x32xf32> to vector<8xf32>
    %9 = vector.shape_cast %8 : vector<8xf32> to vector<8x1xf32>
    %10 = vector.broadcast %9 : vector<8x1xf32> to vector<8x32xf32>
    %11 = arith.mulf %0, %10 : vector<8x32xf32>
    %12 = vector.broadcast %5 : vector<1x32xf32> to vector<8x32xf32>
    %13 = arith.addf %11, %12 : vector<8x32xf32>
    %14 = arith.addf %13, %0 : vector<8x32xf32>
    %cst_5 = arith.constant dense<0.000000e+00> : vector<1x32xf32>
    %15 = tpu.matmul %1, %14, %cst_5 {dimension_numbers = #tpu.dot_dimension_numbers<[1], [0], [0], [1], [0, 0, 1, 1], [], []>} : vector<1x8xf32>, vector<8x32xf32>, vector<1x32xf32> -> vector<1x32xf32>
    %16 = vector.broadcast %cst_1 : f32 to vector<1x32xf32>
    %17 = arith.mulf %15, %16 : vector<1x32xf32>
    %18 = arith.mulf %14, %14 : vector<8x32xf32>
    %cst_6 = arith.constant dense<0.000000e+00> : vector<1x32xf32>
    %19 = tpu.matmul %1, %18, %cst_6 {dimension_numbers = #tpu.dot_dimension_numbers<[1], [0], [0], [1], [0, 0, 1, 1], [], []>} : vector<1x8xf32>, vector<8x32xf32>, vector<1x32xf32> -> vector<1x32xf32>
    %20 = vector.broadcast %cst_1 : f32 to vector<1x32xf32>
    %21 = arith.mulf %19, %20 : vector<1x32xf32>
    %22 = arith.mulf %17, %17 : vector<1x32xf32>
    %23 = arith.subf %21, %22 : vector<1x32xf32>
    %cst_7 = arith.constant 0.000000e+00 : f32
    %24 = vector.broadcast %cst_7 : f32 to vector<1x32xf32>
    %25 = arith.maximumf %23, %24 : vector<1x32xf32>
    %26 = vector.broadcast %17 : vector<1x32xf32> to vector<8x32xf32>
    %27 = arith.subf %14, %26 : vector<8x32xf32>
    %cst_8 = arith.constant 9.99999974E-6 : f32
    %28 = vector.broadcast %cst_8 : f32 to vector<1x32xf32>
    %29 = arith.addf %25, %28 : vector<1x32xf32>
    %30 = math.rsqrt %29 : vector<1x32xf32>
    %31 = vector.broadcast %30 : vector<1x32xf32> to vector<8x32xf32>
    %32 = arith.mulf %27, %31 : vector<8x32xf32>
    %c1_i32 = arith.constant 1 : i32
    %33 = arith.index_cast %c1_i32 : i32 to index
    %c0_9 = arith.constant 0 : index
    %34 = vector.load %arg1[%33, %c0_9] : memref<3x32xf32, #tpu.memory_space<vmem>>, vector<1x32xf32>
    %35 = arith.index_cast %c1_i32 : i32 to index
    %c0_10 = arith.constant 0 : index
    %36 = vector.load %arg2[%35, %c0_10] : memref<3x32xf32, #tpu.memory_space<vmem>>, vector<1x32xf32>
    %37 = vector.broadcast %34 : vector<1x32xf32> to vector<8x32xf32>
    %38 = arith.mulf %32, %37 : vector<8x32xf32>
    %cst_11 = arith.constant dense<0.000000e+00> : vector<8xf32>
    %39 = vector.multi_reduction <add>, %38, %cst_11 [1] : vector<8x32xf32> to vector<8xf32>
    %40 = vector.shape_cast %39 : vector<8xf32> to vector<8x1xf32>
    %41 = vector.broadcast %40 : vector<8x1xf32> to vector<8x32xf32>
    %42 = arith.mulf %0, %41 : vector<8x32xf32>
    %43 = vector.broadcast %36 : vector<1x32xf32> to vector<8x32xf32>
    %44 = arith.addf %42, %43 : vector<8x32xf32>
    %45 = arith.addf %44, %32 : vector<8x32xf32>
    %cst_12 = arith.constant dense<0.000000e+00> : vector<1x32xf32>
    %46 = tpu.matmul %1, %45, %cst_12 {dimension_numbers = #tpu.dot_dimension_numbers<[1], [0], [0], [1], [0, 0, 1, 1], [], []>} : vector<1x8xf32>, vector<8x32xf32>, vector<1x32xf32> -> vector<1x32xf32>
    %47 = vector.broadcast %cst_1 : f32 to vector<1x32xf32>
    %48 = arith.mulf %46, %47 : vector<1x32xf32>
    %49 = arith.mulf %45, %45 : vector<8x32xf32>
    %cst_13 = arith.constant dense<0.000000e+00> : vector<1x32xf32>
    %50 = tpu.matmul %1, %49, %cst_13 {dimension_numbers = #tpu.dot_dimension_numbers<[1], [0], [0], [1], [0, 0, 1, 1], [], []>} : vector<1x8xf32>, vector<8x32xf32>, vector<1x32xf32> -> vector<1x32xf32>
    %51 = vector.broadcast %cst_1 : f32 to vector<1x32xf32>
    %52 = arith.mulf %50, %51 : vector<1x32xf32>
    %53 = arith.mulf %48, %48 : vector<1x32xf32>
    %54 = arith.subf %52, %53 : vector<1x32xf32>
    %cst_14 = arith.constant 0.000000e+00 : f32
    %55 = vector.broadcast %cst_14 : f32 to vector<1x32xf32>
    %56 = arith.maximumf %54, %55 : vector<1x32xf32>
    %57 = vector.broadcast %48 : vector<1x32xf32> to vector<8x32xf32>
    %58 = arith.subf %45, %57 : vector<8x32xf32>
    %cst_15 = arith.constant 9.99999974E-6 : f32
    %59 = vector.broadcast %cst_15 : f32 to vector<1x32xf32>
    %60 = arith.addf %56, %59 : vector<1x32xf32>
    %61 = math.rsqrt %60 : vector<1x32xf32>
    %62 = vector.broadcast %61 : vector<1x32xf32> to vector<8x32xf32>
    %63 = arith.mulf %58, %62 : vector<8x32xf32>
    %c2_i32 = arith.constant 2 : i32
    %64 = arith.index_cast %c2_i32 : i32 to index
    %c0_16 = arith.constant 0 : index
    %65 = vector.load %arg1[%64, %c0_16] : memref<3x32xf32, #tpu.memory_space<vmem>>, vector<1x32xf32>
    %66 = arith.index_cast %c2_i32 : i32 to index
    %c0_17 = arith.constant 0 : index
    %67 = vector.load %arg2[%66, %c0_17] : memref<3x32xf32, #tpu.memory_space<vmem>>, vector<1x32xf32>
    %68 = vector.broadcast %65 : vector<1x32xf32> to vector<8x32xf32>
    %69 = arith.mulf %63, %68 : vector<8x32xf32>
    %cst_18 = arith.constant dense<0.000000e+00> : vector<8xf32>
    %70 = vector.multi_reduction <add>, %69, %cst_18 [1] : vector<8x32xf32> to vector<8xf32>
    %71 = vector.shape_cast %70 : vector<8xf32> to vector<8x1xf32>
    %72 = vector.broadcast %71 : vector<8x1xf32> to vector<8x32xf32>
    %73 = arith.mulf %0, %72 : vector<8x32xf32>
    %74 = vector.broadcast %67 : vector<1x32xf32> to vector<8x32xf32>
    %75 = arith.addf %73, %74 : vector<8x32xf32>
    %76 = arith.addf %75, %63 : vector<8x32xf32>
    %cst_19 = arith.constant dense<0.000000e+00> : vector<1x32xf32>
    %77 = tpu.matmul %1, %76, %cst_19 {dimension_numbers = #tpu.dot_dimension_numbers<[1], [0], [0], [1], [0, 0, 1, 1], [], []>} : vector<1x8xf32>, vector<8x32xf32>, vector<1x32xf32> -> vector<1x32xf32>
    %78 = vector.broadcast %cst_1 : f32 to vector<1x32xf32>
    %79 = arith.mulf %77, %78 : vector<1x32xf32>
    %80 = arith.mulf %76, %76 : vector<8x32xf32>
    %cst_20 = arith.constant dense<0.000000e+00> : vector<1x32xf32>
    %81 = tpu.matmul %1, %80, %cst_20 {dimension_numbers = #tpu.dot_dimension_numbers<[1], [0], [0], [1], [0, 0, 1, 1], [], []>} : vector<1x8xf32>, vector<8x32xf32>, vector<1x32xf32> -> vector<1x32xf32>
    %82 = vector.broadcast %cst_1 : f32 to vector<1x32xf32>
    %83 = arith.mulf %81, %82 : vector<1x32xf32>
    %84 = arith.mulf %79, %79 : vector<1x32xf32>
    %85 = arith.subf %83, %84 : vector<1x32xf32>
    %cst_21 = arith.constant 0.000000e+00 : f32
    %86 = vector.broadcast %cst_21 : f32 to vector<1x32xf32>
    %87 = arith.maximumf %85, %86 : vector<1x32xf32>
    %88 = vector.broadcast %79 : vector<1x32xf32> to vector<8x32xf32>
    %89 = arith.subf %76, %88 : vector<8x32xf32>
    %cst_22 = arith.constant 9.99999974E-6 : f32
    %90 = vector.broadcast %cst_22 : f32 to vector<1x32xf32>
    %91 = arith.addf %87, %90 : vector<1x32xf32>
    %92 = math.rsqrt %91 : vector<1x32xf32>
    %93 = vector.broadcast %92 : vector<1x32xf32> to vector<8x32xf32>
    %94 = arith.mulf %89, %93 : vector<8x32xf32>
    %c3_i32 = arith.constant 3 : i32
    %c0_23 = arith.constant 0 : index
    %c0_24 = arith.constant 0 : index
    %95 = vector.load %arg3[%c0_23, %c0_24] : memref<8x32xf32, #tpu.memory_space<vmem>>, vector<8x32xf32>
    tpu.vector_store %arg3[%c0_23, %c0_24], %94 {strides = array<i32>} : memref<8x32xf32, #tpu.memory_space<vmem>>, vector<8x32xf32>,
    return
  }
}

</mosaic_0001>

<llo_original>
// kernel: tpu_custom_call.1
$region0: #{tpu_custom_call.1}
  #allocation0 [shape = 'u32[]', space=smem, size = 0x4, offset = 0x4, fixed_abs, tag = 'smem constant byte address 0x4 - core index']
  #allocation1 [shape = 'u32[144,128]{1,0:T(1,128)}', space=vmem, size = 0x12000, scoped, tag = 'internal scratch']
  %s0 = inlined_call_operand.hbm [shape: f32[8,32], index: 0, kind: input, shape index: {}]
  %s1 = inlined_call_operand.hbm [shape: f32[3,32], index: 1, kind: input, shape index: {}]
  %s2 = inlined_call_operand.vmem [shape: f32[3,32], index: 2, kind: input, shape index: {}]
  %s3 = inlined_call_operand.hbm [shape: f32[8,32], index: 3, kind: output, shape index: {}]
  %s4 = sld [smem:[#allocation0]]
  $region30: #{tpu_custom_call.1} parent=0
    _
  %s6 = ssub.s32 1, %s4
  %s7 = scalar_select 0, %s6, %s4
  $region1: #{tpu_custom_call.1} parent=0
    #allocation2 [shape = 'u8[4096]{0}', space=vmem, size = 0x1000, scoped, tag = 'input window, operand 0, single buffered']
    #allocation3 [shape = 's32[1]{0}', space=sflag, size = 0x4, scoped, tag = 'scoped memory for tpu_custom_call.1']
    #allocation4 [shape = 's32[1]{0}', space=sflag, size = 0x4, scoped, tag = 'scoped memory for tpu_custom_call.1']
    #allocation5 [shape = 'u8[2048]{0}', space=vmem, size = 0x800, scoped, tag = 'input window, operand 1, single buffered']
    #allocation6 [shape = 's32[1]{0}', space=sflag, size = 0x4, scoped, tag = 'scoped memory for tpu_custom_call.1']
    #allocation7 [shape = 'u8[4096]{0}', space=vmem, size = 0x1000, scoped, tag = 'output window, operand 0, single buffered']
    %8 = vsyncpa [#allocation3], 0
    %9 = vsyncpa [#allocation6], 0
    %10 = vsyncpa [#allocation4], 0
    // Predicated region
    $region2: #{tpu_custom_call.1} parent=1 // pred_check
      _
    $region3: #{tpu_custom_call.1} parent=1 // pred_check_branch
      %12 = sbr.rel (0) target = $region5
    $region4: #{tpu_custom_call.1} parent=1 // pred_region
      %s14 = ssub.s32 128, 128
      %15 = vsyncadd [#allocation3], %s14
      %s17 = sshll.u32 [#allocation2], 4
      %s18 = int_to_ptr.vmem [resolvable:$true] %s17
      %20 = dma.hbm_to_vmem [thread:$0]  %s0, 128, %s18, [#allocation3]
    $region5: #{tpu_custom_call.1} parent=1 // pred_fallthru
      _
    // Predicated region
    $region6: #{tpu_custom_call.1} parent=1 // pred_check
      _
    $region7: #{tpu_custom_call.1} parent=1 // pred_check_branch
      %22 = sbr.rel (0) target = $region9
    $region8: #{tpu_custom_call.1} parent=1 // pred_region
      %s24 = ssub.s32 64, 64
      %25 = vsyncadd [#allocation6], %s24
      %s27 = sshll.u32 [#allocation5], 4
      %s28 = int_to_ptr.vmem [resolvable:$true] %s27
      %30 = dma.hbm_to_vmem [thread:$0]  %s1, 64, %s28, [#allocation6]
    $region9: #{tpu_custom_call.1} parent=1 // pred_fallthru
      _
    // Predicated region
    $region10: #{tpu_custom_call.1} parent=1 // pred_check
      _
    $region11: #{tpu_custom_call.1} parent=1 // pred_check_branch
      %32 = sbr.rel (0) target = $region13
    $region12: #{tpu_custom_call.1} parent=1 // pred_region
      _
    $region13: #{tpu_custom_call.1} parent=1 // pred_fallthru
      _
    // Predicated region
    $region14: #{tpu_custom_call.1} parent=1 // pred_check
      _
    $region15: #{tpu_custom_call.1} parent=1 // pred_check_branch
      %34 = sbr.rel (0) target = $region17
    $region16: #{tpu_custom_call.1} parent=1 // pred_region
      %35 = dma.done [#allocation3], 128
    $region17: #{tpu_custom_call.1} parent=1 // pred_fallthru
      _
    // Predicated region
    $region18: #{tpu_custom_call.1} parent=1 // pred_check
      _
    $region19: #{tpu_custom_call.1} parent=1 // pred_check_branch
      %37 = sbr.rel (0) target = $region21
    $region20: #{tpu_custom_call.1} parent=1 // pred_region
      %38 = dma.done [#allocation6], 64
    $region21: #{tpu_custom_call.1} parent=1 // pred_fallthru
      _
    %v39 = vld [vmem:[#allocation2] sm:$0xff]
    %v40 = vld [vmem:[#allocation5] sm:$0x1]
    %v41 = vld [vmem:[%s2] sm:$0x1]
    %v42 = vlaneseq
    %v43 = vshrl.u32 %v42, 7
    %v44 = vsub.s32 0, %v43
    %v45 = vrot.slane %v40, %v44
    %v46 = vmul.f32 %v39, %v45
    %vm47 = vcmask 261120
    %v48 = vsel %vm47, %v46, 0.0
    %49 = vadd.xlane.f32.xlu0 %v48
    %v50 = vpop.xlane.xlu0 %49
    %v51 = vmul.f32 %v39, %v50
    %v52 = vlaneseq
    %v53 = vshrl.u32 %v52, 7
    %v54 = vsub.s32 0, %v53
    %v55 = vrot.slane %v41, %v54
    %v56 = vadd.f32 %v51, %v55
    %v57 = vadd.f32 %v56, %v39
    %vm58 = vcmask 64512
    %v60 = vsel %vm58, 1.0, 0
    %62 = vmatprep.subr.mxu0 0.0
    %63 = vmatpush1.msra.mxu0 %v57
    %64 = vmatprep.subr.mxu0 0.0
    %65 = vmatpush1.msra.mxu0 0.0
    %66 = vmatprep.subr.mxu0 0.0
    %67 = vmatpush1.msra.mxu0 0.0
    %68 = vmatprep.subr.mxu0 0.0
    %69 = vmatpush1.msra.mxu0 0.0
    %70 = vmatprep.subr.mxu0 0.0
    %71 = vmatpush1.msra.mxu0 0.0
    %72 = vmatprep.subr.mxu0 0.0
    %73 = vmatpush1.msra.mxu0 0.0
    %74 = vmatprep.subr.mxu0 0.0
    %75 = vmatpush1.msra.mxu0 0.0
    %76 = vmatprep.subr.mxu0 0.0
    %77 = vmatpush1.msra.mxu0 0.0
    %78 = vmatprep.subr.mxu0 0.0
    %79 = vmatpush1.msra.mxu0 0.0
    %80 = vmatprep.subr.mxu0 0.0
    %81 = vmatpush1.msra.mxu0 0.0
    %82 = vmatprep.subr.mxu0 0.0
    %83 = vmatpush1.msra.mxu0 0.0
    %84 = vmatprep.subr.mxu0 0.0
    %85 = vmatpush1.msra.mxu0 0.0
    %86 = vmatprep.subr.mxu0 0.0
    %87 = vmatpush1.msra.mxu0 0.0
    %88 = vmatprep.subr.mxu0 0.0
    %89 = vmatpush1.msra.mxu0 0.0
    %90 = vmatprep.subr.mxu0 0.0
    %91 = vmatpush1.msra.mxu0 0.0
    %92 = vmatprep.subr.mxu0 0.0
    %93 = vmatpush1.msra.mxu0 0.0
    %94 = vmatprep.subr.mxu0 0.0
    %95 = vmatpush1.msra.mxu0 0.0
    %96 = vmatprep.subr.mxu0 0.0
    %97 = vmatpush1.msra.mxu0 0.0
    %98 = vmatprep.subr.mxu0 0.0
    %99 = vmatpush1.msra.mxu0 0.0
    %100 = vmatprep.subr.mxu0 0.0
    %101 = vmatpush1.msra.mxu0 0.0
    %102 = vmatprep.subr.mxu0 0.0
    %103 = vmatpush1.msra.mxu0 0.0
    %104 = vmatprep.subr.mxu0 0.0
    %105 = vmatpush1.msra.mxu0 0.0
    %106 = vmatprep.subr.mxu0 0.0
    %107 = vmatpush1.msra.mxu0 0.0
    %108 = vmatprep.subr.mxu0 0.0
    %109 = vmatpush1.msra.mxu0 0.0
    %110 = vmatprep.subr.mxu0 0.0
    %111 = vmatpush1.msra.mxu0 0.0
    %112 = vmatprep.subr.mxu0 0.0
    %113 = vmatpush1.msra.mxu0 0.0
    %114 = vmatprep.subr.mxu0 0.0
    %115 = vmatpush1.msra.mxu0 0.0
    %116 = vmatprep.subr.mxu0 0.0
    %117 = vmatpush1.msra.mxu0 0.0
    %118 = vmatprep.subr.mxu0 0.0
    %119 = vmatpush1.msra.mxu0 0.0
    %120 = vmatprep.subr.mxu0 0.0
    %121 = vmatpush1.msra.mxu0 0.0
    %122 = vmatprep.subr.mxu0 0.0
    %123 = vmatpush1.msra.mxu0 0.0
    %124 = vmatprep.subr.mxu0 0.0
    %125 = vmatpush1.msra.mxu0 0.0
    %126 = vmatprep.mubr.f32.mxu0 0.0
    %127 = vmatmul.mubr.f32.gmra.mrb[0].mxu0 %v60
    %v128 = vpop.f32.mrb[0].mxu0
    %v129 = vadd.f32 0.0, %v128
    %v130 = vpop.f32.mrb[0].mxu0
    %131 = vdwg.mxu0
    %v132 = vmul.f32 %v129, 0.125
    %v133 = vmul.f32 %v57, %v57
    %134 = vmatprep.subr.mxu0 0.0
    %135 = vmatpush1.msra.mxu0 %v133
    %136 = vmatprep.subr.mxu0 0.0
    %137 = vmatpush1.msra.mxu0 0.0
    %138 = vmatprep.subr.mxu0 0.0
    %139 = vmatpush1.msra.mxu0 0.0
    %140 = vmatprep.subr.mxu0 0.0
    %141 = vmatpush1.msra.mxu0 0.0
    %142 = vmatprep.subr.mxu0 0.0
    %143 = vmatpush1.msra.mxu0 0.0
    %144 = vmatprep.subr.mxu0 0.0
    %145 = vmatpush1.msra.mxu0 0.0
    %146 = vmatprep.subr.mxu0 0.0
    %147 = vmatpush1.msra.mxu0 0.0
    %148 = vmatprep.subr.mxu0 0.0
    %149 = vmatpush1.msra.mxu0 0.0
    %150 = vmatprep.subr.mxu0 0.0
    %151 = vmatpush1.msra.mxu0 0.0
    %152 = vmatprep.subr.mxu0 0.0
    %153 = vmatpush1.msra.mxu0 0.0
    %154 = vmatprep.subr.mxu0 0.0
    %155 = vmatpush1.msra.mxu0 0.0
    %156 = vmatprep.subr.mxu0 0.0
    %157 = vmatpush1.msra.mxu0 0.0
    %158 = vmatprep.subr.mxu0 0.0
    %159 = vmatpush1.msra.mxu0 0.0
    %160 = vmatprep.subr.mxu0 0.0
    %161 = vmatpush1.msra.mxu0 0.0
    %162 = vmatprep.subr.mxu0 0.0
    %163 = vmatpush1.msra.mxu0 0.0
    %164 = vmatprep.subr.mxu0 0.0
    %165 = vmatpush1.msra.mxu0 0.0
    %166 = vmatprep.subr.mxu0 0.0
    %167 = vmatpush1.msra.mxu0 0.0
    %168 = vmatprep.subr.mxu0 0.0
    %169 = vmatpush1.msra.mxu0 0.0
    %170 = vmatprep.subr.mxu0 0.0
    %171 = vmatpush1.msra.mxu0 0.0
    %172 = vmatprep.subr.mxu0 0.0
    %173 = vmatpush1.msra.mxu0 0.0
    %174 = vmatprep.subr.mxu0 0.0
    %175 = vmatpush1.msra.mxu0 0.0
    %176 = vmatprep.subr.mxu0 0.0
    %177 = vmatpush1.msra.mxu0 0.0
    %178 = vmatprep.subr.mxu0 0.0
    %179 = vmatpush1.msra.mxu0 0.0
    %180 = vmatprep.subr.mxu0 0.0
    %181 = vmatpush1.msra.mxu0 0.0
    %182 = vmatprep.subr.mxu0 0.0
    %183 = vmatpush1.msra.mxu0 0.0
    %184 = vmatprep.subr.mxu0 0.0
    %185 = vmatpush1.msra.mxu0 0.0
    %186 = vmatprep.subr.mxu0 0.0
    %187 = vmatpush1.msra.mxu0 0.0
    %188 = vmatprep.subr.mxu0 0.0
    %189 = vmatpush1.msra.mxu0 0.0
    %190 = vmatprep.subr.mxu0 0.0
    %191 = vmatpush1.msra.mxu0 0.0
    %192 = vmatprep.subr.mxu0 0.0
    %193 = vmatpush1.msra.mxu0 0.0
    %194 = vmatprep.subr.mxu0 0.0
    %195 = vmatpush1.msra.mxu0 0.0
    %196 = vmatprep.subr.mxu0 0.0
    %197 = vmatpush1.msra.mxu0 0.0
    %198 = vmatprep.mubr.f32.mxu0 0.0
    %199 = vmatmul.mubr.f32.gmra.mrb[0].mxu0 %v60
    %v200 = vpop.f32.mrb[0].mxu0
    %v201 = vadd.f32 0.0, %v200
    %v202 = vpop.f32.mrb[0].mxu0
    %203 = vdwg.mxu0
    %v204 = vmul.f32 %v201, 0.125
    %v205 = vmul.f32 %v132, %v132
    %v206 = vsub.f32 %v204, %v205
    %v207 = vmax.f32 %v206, 0.0
    %v208 = vlaneseq
    %v209 = vshrl.u32 %v208, 7
    %v210 = vsub.s32 0, %v209
    %v211 = vrot.slane %v132, %v210
    %v212 = vsub.f32 %v57, %v211
    %v213 = vadd.f32 %v207, 1e-05
    %v214 = vrsqrt.pop %v213
    %v215 = vlaneseq
    %v216 = vshrl.u32 %v215, 7
    %v217 = vsub.s32 0, %v216
    %v218 = vrot.slane %v214, %v217
    %v219 = vmul.f32 %v212, %v218
    %v220 = vld [vmem:[#allocation5 + $0x1] sm:$0x1]
    %v221 = vld [vmem:[%s2 + $0x1] sm:$0x1]
    %v222 = vlaneseq
    %v223 = vshrl.u32 %v222, 7
    %v224 = vsub.s32 0, %v223
    %v225 = vrot.slane %v220, %v224
    %v226 = vmul.f32 %v219, %v225
    %v227 = vsel %vm47, %v226, 0.0
    %228 = vadd.xlane.f32.xlu0 %v227
    %v229 = vpop.xlane.xlu0 %228
    %v230 = vmul.f32 %v39, %v229
    %v231 = vlaneseq
    %v232 = vshrl.u32 %v231, 7
    %v233 = vsub.s32 0, %v232
    %v234 = vrot.slane %v221, %v233
    %v235 = vadd.f32 %v230, %v234
    %v236 = vadd.f32 %v235, %v219
    %237 = vmatprep.subr.mxu0 0.0
    %238 = vmatpush1.msra.mxu0 %v236
    %239 = vmatprep.subr.mxu0 0.0
    %240 = vmatpush1.msra.mxu0 0.0
    %241 = vmatprep.subr.mxu0 0.0
    %242 = vmatpush1.msra.mxu0 0.0
    %243 = vmatprep.subr.mxu0 0.0
    %244 = vmatpush1.msra.mxu0 0.0
    %245 = vmatprep.subr.mxu0 0.0
    %246 = vmatpush1.msra.mxu0 0.0
    %247 = vmatprep.subr.mxu0 0.0
    %248 = vmatpush1.msra.mxu0 0.0
    %249 = vmatprep.subr.mxu0 0.0
    %250 = vmatpush1.msra.mxu0 0.0
    %251 = vmatprep.subr.mxu0 0.0
    %252 = vmatpush1.msra.mxu0 0.0
    %253 = vmatprep.subr.mxu0 0.0
    %254 = vmatpush1.msra.mxu0 0.0
    %255 = vmatprep.subr.mxu0 0.0
    %256 = vmatpush1.msra.mxu0 0.0
    %257 = vmatprep.subr.mxu0 0.0
    %258 = vmatpush1.msra.mxu0 0.0
    %259 = vmatprep.subr.mxu0 0.0
    %260 = vmatpush1.msra.mxu0 0.0
    %261 = vmatprep.subr.mxu0 0.0
    %262 = vmatpush1.msra.mxu0 0.0
    %263 = vmatprep.subr.mxu0 0.0
    %264 = vmatpush1.msra.mxu0 0.0
    %265 = vmatprep.subr.mxu0 0.0
    %266 = vmatpush1.msra.mxu0 0.0
    %267 = vmatprep.subr.mxu0 0.0
    %268 = vmatpush1.msra.mxu0 0.0
    %269 = vmatprep.subr.mxu0 0.0
    %270 = vmatpush1.msra.mxu0 0.0
    %271 = vmatprep.subr.mxu0 0.0
    %272 = vmatpush1.msra.mxu0 0.0
    %273 = vmatprep.subr.mxu0 0.0
    %274 = vmatpush1.msra.mxu0 0.0
    %275 = vmatprep.subr.mxu0 0.0
    %276 = vmatpush1.msra.mxu0 0.0
    %277 = vmatprep.subr.mxu0 0.0
    %278 = vmatpush1.msra.mxu0 0.0
    %279 = vmatprep.subr.mxu0 0.0
    %280 = vmatpush1.msra.mxu0 0.0
    %281 = vmatprep.subr.mxu0 0.0
    %282 = vmatpush1.msra.mxu0 0.0
    %283 = vmatprep.subr.mxu0 0.0
    %284 = vmatpush1.msra.mxu0 0.0
    %285 = vmatprep.subr.mxu0 0.0
    %286 = vmatpush1.msra.mxu0 0.0
    %287 = vmatprep.subr.mxu0 0.0
    %288 = vmatpush1.msra.mxu0 0.0
    %289 = vmatprep.subr.mxu0 0.0
    %290 = vmatpush1.msra.mxu0 0.0
    %291 = vmatprep.subr.mxu0 0.0
    %292 = vmatpush1.msra.mxu0 0.0
    %293 = vmatprep.subr.mxu0 0.0
    %294 = vmatpush1.msra.mxu0 0.0
    %295 = vmatprep.subr.mxu0 0.0
    %296 = vmatpush1.msra.mxu0 0.0
    %297 = vmatprep.subr.mxu0 0.0
    %298 = vmatpush1.msra.mxu0 0.0
    %299 = vmatprep.subr.mxu0 0.0
    %300 = vmatpush1.msra.mxu0 0.0
    %301 = vmatprep.mubr.f32.mxu0 0.0
    %302 = vmatmul.mubr.f32.gmra.mrb[0].mxu0 %v60
    %v303 = vpop.f32.mrb[0].mxu0
    %v304 = vadd.f32 0.0, %v303
    %v305 = vpop.f32.mrb[0].mxu0
    %306 = vdwg.mxu0
    %v307 = vmul.f32 %v304, 0.125
    %v308 = vmul.f32 %v236, %v236
    %309 = vmatprep.subr.mxu0 0.0
    %310 = vmatpush1.msra.mxu0 %v308
    %311 = vmatprep.subr.mxu0 0.0
    %312 = vmatpush1.msra.mxu0 0.0
    %313 = vmatprep.subr.mxu0 0.0
    %314 = vmatpush1.msra.mxu0 0.0
    %315 = vmatprep.subr.mxu0 0.0
    %316 = vmatpush1.msra.mxu0 0.0
    %317 = vmatprep.subr.mxu0 0.0
    %318 = vmatpush1.msra.mxu0 0.0
    %319 = vmatprep.subr.mxu0 0.0
    %320 = vmatpush1.msra.mxu0 0.0
    %321 = vmatprep.subr.mxu0 0.0
    %322 = vmatpush1.msra.mxu0 0.0
    %323 = vmatprep.subr.mxu0 0.0
    %324 = vmatpush1.msra.mxu0 0.0
    %325 = vmatprep.subr.mxu0 0.0
    %326 = vmatpush1.msra.mxu0 0.0
    %327 = vmatprep.subr.mxu0 0.0
    %328 = vmatpush1.msra.mxu0 0.0
    %329 = vmatprep.subr.mxu0 0.0
    %330 = vmatpush1.msra.mxu0 0.0
    %331 = vmatprep.subr.mxu0 0.0
    %332 = vmatpush1.msra.mxu0 0.0
    %333 = vmatprep.subr.mxu0 0.0
    %334 = vmatpush1.msra.mxu0 0.0
    %335 = vmatprep.subr.mxu0 0.0
    %336 = vmatpush1.msra.mxu0 0.0
    %337 = vmatprep.subr.mxu0 0.0
    %338 = vmatpush1.msra.mxu0 0.0
    %339 = vmatprep.subr.mxu0 0.0
    %340 = vmatpush1.msra.mxu0 0.0
    %341 = vmatprep.subr.mxu0 0.0
    %342 = vmatpush1.msra.mxu0 0.0
    %343 = vmatprep.subr.mxu0 0.0
    %344 = vmatpush1.msra.mxu0 0.0
    %345 = vmatprep.subr.mxu0 0.0
    %346 = vmatpush1.msra.mxu0 0.0
    %347 = vmatprep.subr.mxu0 0.0
    %348 = vmatpush1.msra.mxu0 0.0
    %349 = vmatprep.subr.mxu0 0.0
    %350 = vmatpush1.msra.mxu0 0.0
    %351 = vmatprep.subr.mxu0 0.0
    %352 = vmatpush1.msra.mxu0 0.0
    %353 = vmatprep.subr.mxu0 0.0
    %354 = vmatpush1.msra.mxu0 0.0
    %355 = vmatprep.subr.mxu0 0.0
    %356 = vmatpush1.msra.mxu0 0.0
    %357 = vmatprep.subr.mxu0 0.0
    %358 = vmatpush1.msra.mxu0 0.0
    %359 = vmatprep.subr.mxu0 0.0
    %360 = vmatpush1.msra.mxu0 0.0
    %361 = vmatprep.subr.mxu0 0.0
    %362 = vmatpush1.msra.mxu0 0.0
    %363 = vmatprep.subr.mxu0 0.0
    %364 = vmatpush1.msra.mxu0 0.0
    %365 = vmatprep.subr.mxu0 0.0
    %366 = vmatpush1.msra.mxu0 0.0
    %367 = vmatprep.subr.mxu0 0.0
    %368 = vmatpush1.msra.mxu0 0.0
    %369 = vmatprep.subr.mxu0 0.0
    %370 = vmatpush1.msra.mxu0 0.0
    %371 = vmatprep.subr.mxu0 0.0
    %372 = vmatpush1.msra.mxu0 0.0
    %373 = vmatprep.mubr.f32.mxu0 0.0
    %374 = vmatmul.mubr.f32.gmra.mrb[0].mxu0 %v60
    %v375 = vpop.f32.mrb[0].mxu0
    %v376 = vadd.f32 0.0, %v375
    %v377 = vpop.f32.mrb[0].mxu0
    %378 = vdwg.mxu0
    %v379 = vmul.f32 %v376, 0.125
    %v380 = vmul.f32 %v307, %v307
    %v381 = vsub.f32 %v379, %v380
    %v382 = vmax.f32 %v381, 0.0
    %v383 = vlaneseq
    %v384 = vshrl.u32 %v383, 7
    %v385 = vsub.s32 0, %v384
    %v386 = vrot.slane %v307, %v385
    %v387 = vsub.f32 %v236, %v386
    %v388 = vadd.f32 %v382, 1e-05
    %v389 = vrsqrt.pop %v388
    %v390 = vlaneseq
    %v391 = vshrl.u32 %v390, 7
    %v392 = vsub.s32 0, %v391
    %v393 = vrot.slane %v389, %v392
    %v394 = vmul.f32 %v387, %v393
    %v395 = vld [vmem:[#allocation5 + $0x2] sm:$0x1]
    %v396 = vld [vmem:[%s2 + $0x2] sm:$0x1]
    %v397 = vlaneseq
    %v398 = vshrl.u32 %v397, 7
    %v399 = vsub.s32 0, %v398
    %v400 = vrot.slane %v395, %v399
    %v401 = vmul.f32 %v394, %v400
    %v402 = vsel %vm47, %v401, 0.0
    %403 = vadd.xlane.f32.xlu0 %v402
    %v404 = vpop.xlane.xlu0 %403
    %v405 = vmul.f32 %v39, %v404
    %v406 = vlaneseq
    %v407 = vshrl.u32 %v406, 7
    %v408 = vsub.s32 0, %v407
    %v409 = vrot.slane %v396, %v408
    %v410 = vadd.f32 %v405, %v409
    %v411 = vadd.f32 %v410, %v394
    %412 = vmatprep.subr.mxu0 0.0
    %413 = vmatpush1.msra.mxu0 %v411
    %414 = vmatprep.subr.mxu0 0.0
    %415 = vmatpush1.msra.mxu0 0.0
    %416 = vmatprep.subr.mxu0 0.0
    %417 = vmatpush1.msra.mxu0 0.0
    %418 = vmatprep.subr.mxu0 0.0
    %419 = vmatpush1.msra.mxu0 0.0
    %420 = vmatprep.subr.mxu0 0.0
    %421 = vmatpush1.msra.mxu0 0.0
    %422 = vmatprep.subr.mxu0 0.0
    %423 = vmatpush1.msra.mxu0 0.0
    %424 = vmatprep.subr.mxu0 0.0
    %425 = vmatpush1.msra.mxu0 0.0
    %426 = vmatprep.subr.mxu0 0.0
    %427 = vmatpush1.msra.mxu0 0.0
    %428 = vmatprep.subr.mxu0 0.0
    %429 = vmatpush1.msra.mxu0 0.0
    %430 = vmatprep.subr.mxu0 0.0
    %431 = vmatpush1.msra.mxu0 0.0
    %432 = vmatprep.subr.mxu0 0.0
    %433 = vmatpush1.msra.mxu0 0.0
    %434 = vmatprep.subr.mxu0 0.0
    %435 = vmatpush1.msra.mxu0 0.0
    %436 = vmatprep.subr.mxu0 0.0
    %437 = vmatpush1.msra.mxu0 0.0
    %438 = vmatprep.subr.mxu0 0.0
    %439 = vmatpush1.msra.mxu0 0.0
    %440 = vmatprep.subr.mxu0 0.0
    %441 = vmatpush1.msra.mxu0 0.0
    %442 = vmatprep.subr.mxu0 0.0
    %443 = vmatpush1.msra.mxu0 0.0
    %444 = vmatprep.subr.mxu0 0.0
    %445 = vmatpush1.msra.mxu0 0.0
    %446 = vmatprep.subr.mxu0 0.0
    %447 = vmatpush1.msra.mxu0 0.0
    %448 = vmatprep.subr.mxu0 0.0
    %449 = vmatpush1.msra.mxu0 0.0
    %450 = vmatprep.subr.mxu0 0.0
    %451 = vmatpush1.msra.mxu0 0.0
    %452 = vmatprep.subr.mxu0 0.0
    %453 = vmatpush1.msra.mxu0 0.0
    %454 = vmatprep.subr.mxu0 0.0
    %455 = vmatpush1.msra.mxu0 0.0
    %456 = vmatprep.subr.mxu0 0.0
    %457 = vmatpush1.msra.mxu0 0.0
    %458 = vmatprep.subr.mxu0 0.0
    %459 = vmatpush1.msra.mxu0 0.0
    %460 = vmatprep.subr.mxu0 0.0
    %461 = vmatpush1.msra.mxu0 0.0
    %462 = vmatprep.subr.mxu0 0.0
    %463 = vmatpush1.msra.mxu0 0.0
    %464 = vmatprep.subr.mxu0 0.0
    %465 = vmatpush1.msra.mxu0 0.0
    %466 = vmatprep.subr.mxu0 0.0
    %467 = vmatpush1.msra.mxu0 0.0
    %468 = vmatprep.subr.mxu0 0.0
    %469 = vmatpush1.msra.mxu0 0.0
    %470 = vmatprep.subr.mxu0 0.0
    %471 = vmatpush1.msra.mxu0 0.0
    %472 = vmatprep.subr.mxu0 0.0
    %473 = vmatpush1.msra.mxu0 0.0
    %474 = vmatprep.subr.mxu0 0.0
    %475 = vmatpush1.msra.mxu0 0.0
    %476 = vmatprep.mubr.f32.mxu0 0.0
    %477 = vmatmul.mubr.f32.gmra.mrb[0].mxu0 %v60
    %v478 = vpop.f32.mrb[0].mxu0
    %v479 = vadd.f32 0.0, %v478
    %v480 = vpop.f32.mrb[0].mxu0
    %481 = vdwg.mxu0
    %v482 = vmul.f32 %v479, 0.125
    %v483 = vmul.f32 %v411, %v411
    %484 = vmatprep.subr.mxu0 0.0
    %485 = vmatpush1.msra.mxu0 %v483
    %486 = vmatprep.subr.mxu0 0.0
    %487 = vmatpush1.msra.mxu0 0.0
    %488 = vmatprep.subr.mxu0 0.0
    %489 = vmatpush1.msra.mxu0 0.0
    %490 = vmatprep.subr.mxu0 0.0
    %491 = vmatpush1.msra.mxu0 0.0
    %492 = vmatprep.subr.mxu0 0.0
    %493 = vmatpush1.msra.mxu0 0.0
    %494 = vmatprep.subr.mxu0 0.0
    %495 = vmatpush1.msra.mxu0 0.0
    %496 = vmatprep.subr.mxu0 0.0
    %497 = vmatpush1.msra.mxu0 0.0
    %498 = vmatprep.subr.mxu0 0.0
    %499 = vmatpush1.msra.mxu0 0.0
    %500 = vmatprep.subr.mxu0 0.0
    %501 = vmatpush1.msra.mxu0 0.0
    %502 = vmatprep.subr.mxu0 0.0
    %503 = vmatpush1.msra.mxu0 0.0
    %504 = vmatprep.subr.mxu0 0.0
    %505 = vmatpush1.msra.mxu0 0.0
    %506 = vmatprep.subr.mxu0 0.0
    %507 = vmatpush1.msra.mxu0 0.0
    %508 = vmatprep.subr.mxu0 0.0
    %509 = vmatpush1.msra.mxu0 0.0
    %510 = vmatprep.subr.mxu0 0.0
    %511 = vmatpush1.msra.mxu0 0.0
    %512 = vmatprep.subr.mxu0 0.0
    %513 = vmatpush1.msra.mxu0 0.0
    %514 = vmatprep.subr.mxu0 0.0
    %515 = vmatpush1.msra.mxu0 0.0
    %516 = vmatprep.subr.mxu0 0.0
    %517 = vmatpush1.msra.mxu0 0.0
    %518 = vmatprep.subr.mxu0 0.0
    %519 = vmatpush1.msra.mxu0 0.0
    %520 = vmatprep.subr.mxu0 0.0
    %521 = vmatpush1.msra.mxu0 0.0
    %522 = vmatprep.subr.mxu0 0.0
    %523 = vmatpush1.msra.mxu0 0.0
    %524 = vmatprep.subr.mxu0 0.0
    %525 = vmatpush1.msra.mxu0 0.0
    %526 = vmatprep.subr.mxu0 0.0
    %527 = vmatpush1.msra.mxu0 0.0
    %528 = vmatprep.subr.mxu0 0.0
    %529 = vmatpush1.msra.mxu0 0.0
    %530 = vmatprep.subr.mxu0 0.0
    %531 = vmatpush1.msra.mxu0 0.0
    %532 = vmatprep.subr.mxu0 0.0
    %533 = vmatpush1.msra.mxu0 0.0
    %534 = vmatprep.subr.mxu0 0.0
    %535 = vmatpush1.msra.mxu0 0.0
    %536 = vmatprep.subr.mxu0 0.0
    %537 = vmatpush1.msra.mxu0 0.0
    %538 = vmatprep.subr.mxu0 0.0
    %539 = vmatpush1.msra.mxu0 0.0
    %540 = vmatprep.subr.mxu0 0.0
    %541 = vmatpush1.msra.mxu0 0.0
    %542 = vmatprep.subr.mxu0 0.0
    %543 = vmatpush1.msra.mxu0 0.0
    %544 = vmatprep.subr.mxu0 0.0
    %545 = vmatpush1.msra.mxu0 0.0
    %546 = vmatprep.subr.mxu0 0.0
    %547 = vmatpush1.msra.mxu0 0.0
    %548 = vmatprep.mubr.f32.mxu0 0.0
    %549 = vmatmul.mubr.f32.gmra.mrb[0].mxu0 %v60
    %v550 = vpop.f32.mrb[0].mxu0
    %v551 = vadd.f32 0.0, %v550
    %v552 = vpop.f32.mrb[0].mxu0
    %553 = vdwg.mxu0
    %v554 = vmul.f32 %v551, 0.125
    %v555 = vmul.f32 %v482, %v482
    %v556 = vsub.f32 %v554, %v555
    %v557 = vmax.f32 %v556, 0.0
    %v558 = vlaneseq
    %v559 = vshrl.u32 %v558, 7
    %v560 = vsub.s32 0, %v559
    %v561 = vrot.slane %v482, %v560
    %v562 = vsub.f32 %v411, %v561
    %v563 = vadd.f32 %v557, 1e-05
    %v564 = vrsqrt.pop %v563
    %v565 = vlaneseq
    %v566 = vshrl.u32 %v565, 7
    %v567 = vsub.s32 0, %v566
    %v568 = vrot.slane %v564, %v567
    %v569 = vmul.f32 %v562, %v568
    %570 = vst.msk [vmem:[#allocation7] sm:$0xff] %vm47, %v569
    // Predicated region
    $region22: #{tpu_custom_call.1} parent=1 // pred_check
      _
    $region23: #{tpu_custom_call.1} parent=1 // pred_check_branch
      %572 = sbr.rel (0) target = $region25
    $region24: #{tpu_custom_call.1} parent=1 // pred_region
      %s574 = ssub.s32 128, 128
      %575 = vsyncadd [#allocation4], %s574
      %s577 = sshll.u32 [#allocation7], 4
      %s578 = int_to_ptr.vmem [resolvable:$true] %s577
      %580 = dma.vmem_to_hbm [thread:$0]  %s578, 128, %s3, [#allocation4]
    $region25: #{tpu_custom_call.1} parent=1 // pred_fallthru
      _
    // Predicated region
    $region26: #{tpu_custom_call.1} parent=1 // pred_check
      _
    $region27: #{tpu_custom_call.1} parent=1 // pred_check_branch
      %582 = sbr.rel (0) target = $region29
    $region28: #{tpu_custom_call.1} parent=1 // pred_region
      %583 = dma.done [#allocation4], 128
    $region29: #{tpu_custom_call.1} parent=1 // pred_fallthru
      _
    %584 = vsyncpa [#allocation3], 1
    %585 = vsyncpa [#allocation6], 1
    %586 = vsyncpa [#allocation4], 1

</llo_original>
